<compile_context>
chip_gen: v6e
topology: v6e:2x2x1
jax: 0.10.0
libtpu: 0.0.40
codegen_flags: <defaults>
</compile_context>

<pallas_src>
import functools

import jax
import jax.numpy as jnp
from jax import lax
from jax.experimental import pallas as pl
from jax.experimental.pallas import tpu as pltpu


def _convblock_kernel(x_ref, w_ref, b_ref, o_ref):
    # x_ref: (N, Hp, K2P)   padded NHWC input, (W, Cin) lane-packed per row,
    #                       lane dim zero-padded to a multiple of 128
    # w_ref: (KH, K2P, NL)  width-lowered (Toeplitz) conv weight, BN scale folded in
    # b_ref: (1, NL)        fused BN bias, tiled per output-pixel lane
    # o_ref: (N*Ho, NL)     lane-dense output block (NL = Wo*Cout)
    n, _, k2 = x_ref.shape
    kh_total, _, nl = w_ref.shape
    m = o_ref.shape[0]
    ho = m // n

    acc = jnp.zeros((m, nl), jnp.float32)
    for kh in range(kh_total):                          # unrolled: KH static MXU dots
        slab = x_ref[:, kh:kh + ho, :].reshape(m, k2)   # in-VMEM im2col-along-H slab
        acc = acc + jnp.dot(slab, w_ref[kh],
                            preferred_element_type=jnp.float32)
    y = acc + b_ref[...]                                # BatchNorm (inference), fused
    o_ref[...] = jnp.maximum(y, 0.0).astype(o_ref.dtype)   # ReLU


def prepare_convblock_constants(w_oihw, gamma, beta, run_mean, run_var,
                                *, in_width, padding=1, bn_eps=1e-5,
                                compute_dtype=jnp.float32):
    """One-time (static-weight) lowering: Toeplitz W2 with BN scale folded + BN bias."""
    Cout, Cin, KH, KW = w_oihw.shape
    Wp = in_width + 2 * padding
    Wo = Wp - KW + 1
    K2 = Wp * Cin
    K2P = int(pl.cdiv(K2, 128) * 128)          # lane-pad contraction to multiple of 128

    scale = (gamma / jnp.sqrt(run_var + bn_eps)).astype(jnp.float32)   # (Cout,)
    bias = (beta - run_mean * scale).astype(jnp.float32)               # (Cout,)

    # Fold BN scale into the conv weight columns.
    w_hwio = jnp.transpose(w_oihw, (2, 3, 1, 0)).astype(jnp.float32)   # (KH,KW,Cin,Cout)
    w_scaled = w_hwio * scale[None, None, None, :]

    # W2[kh, wi*Cin+ci, wo*Cout+co] = w_scaled[kh, wi-wo, ci, co] if 0<=wi-wo<KW else 0
    sel = (jnp.arange(Wp)[None, :, None] ==
           (jnp.arange(Wo)[None, None, :] + jnp.arange(KW)[:, None, None])
           ).astype(jnp.float32)                                       # (KW, Wp, Wo)
    w2 = jnp.einsum('hkic,kpw->hpiwc', w_scaled, sel).reshape(KH, K2, Wo * Cout)
    if K2P > K2:
        w2 = jnp.pad(w2, ((0, 0), (0, K2P - K2), (0, 0)))
    w2 = w2.astype(compute_dtype)

    bias2 = jnp.tile(bias, Wo).reshape(1, Wo * Cout)   # lane wo*Cout+co -> bias[co]
    return w2, bias2


@functools.partial(jax.jit, static_argnames=("padding", "out_channels"))
def convblock_pallas(x_nchw, w2, bias2, *, padding=1, out_channels):
    N, Cin, H, W = x_nchw.shape
    KH, K2P, NL = w2.shape
    Hp, Wp = H + 2 * padding, W + 2 * padding
    Ho = Hp - KH + 1
    Cout = out_channels
    Wo = NL // Cout
    M = N * Ho
    K2 = Wp * Cin

    # glue (one XLA fusion): NCHW -> NHWC, zero-pad, lane-pack (W,Cin), pad K2 -> K2P
    x_nhwc = jnp.transpose(x_nchw, (0, 2, 3, 1))
    x_pad = jnp.pad(x_nhwc, ((0, 0), (padding, padding), (padding, padding), (0, 0)))
    x3 = x_pad.reshape(N, Hp, K2)
    if K2P > K2:
        x3 = jnp.pad(x3, ((0, 0), (0, 0), (0, K2P - K2)))
    x3 = x3.astype(w2.dtype)

    bytes_accessed = (N * Hp * K2P * x3.dtype.itemsize
                      + KH * K2P * NL * w2.dtype.itemsize
                      + NL * bias2.dtype.itemsize
                      + M * NL * x_nchw.dtype.itemsize)
    cost = pl.CostEstimate(flops=2 * M * (KH * K2P) * NL,
                           transcendentals=0,
                           bytes_accessed=bytes_accessed)

    out2 = pl.pallas_call(
        _convblock_kernel,
        out_shape=jax.ShapeDtypeStruct((M, NL), x_nchw.dtype),
        grid_spec=pltpu.PrefetchScalarGridSpec(
            num_scalar_prefetch=0,
            grid=(1,),   # no M split: single-TC chips would pay a serial extra step
            in_specs=[
                pl.BlockSpec((N, Hp, K2P), lambda i: (0, 0, 0)),
                pl.BlockSpec((KH, K2P, NL), lambda i: (0, 0, 0)),
                pl.BlockSpec((1, NL), lambda i: (0, 0)),
            ],
            out_specs=pl.BlockSpec((M, NL), lambda i: (0, 0)),
        ),
        compiler_params=pltpu.CompilerParams(
            dimension_semantics=("arbitrary",)),
        cost_estimate=cost,
    )(x3, w2, bias2)

    # glue: (N*Ho, Wo*Cout) -> NHWC -> NCHW (PyTorch contract)
    out_nhwc = out2.reshape(N, Ho, Wo, Cout)
    return jnp.transpose(out_nhwc, (0, 3, 1, 2))


def _reference(x_nchw, w_oihw, gamma, beta, run_mean, run_var,
               *, stride=1, padding=1, bn_eps=1e-5):
    y = lax.conv_general_dilated(
        x_nchw.astype(jnp.float32), w_oihw.astype(jnp.float32),
        window_strides=(stride, stride),
        padding=((padding, padding), (padding, padding)),
        dimension_numbers=("NCHW", "OIHW", "NCHW"))
    inv = 1.0 / jnp.sqrt(run_var + bn_eps)
    y = (y - run_mean[None, :, None, None]) * (gamma * inv)[None, :, None, None] \
        + beta[None, :, None, None]
    return jnp.maximum(y, 0.0)


if __name__ == "__main__":
    # Module config: ConvBlock(in_channels=4, out_channels=8, kernel_size=3,
    #                          stride=1, padding=1, bias=False, use_bn=True)
    N, Cin, H, W = 2, 4, 16, 16
    Cout, KH, KW = 8, 3, 3

    key = jax.random.PRNGKey(0)
    k_x, k_w, k_g, k_b, k_m, k_v = jax.random.split(key, 6)

    x = jax.random.normal(k_x, (N, Cin, H, W), dtype=jnp.float32)
    w = jax.random.normal(k_w, (Cout, Cin, KH, KW), dtype=jnp.float32) * 0.1
    gamma = 1.0 + 0.1 * jax.random.normal(k_g, (Cout,), dtype=jnp.float32)
    beta = 0.1 * jax.random.normal(k_b, (Cout,), dtype=jnp.float32)
    run_mean = 0.1 * jax.random.normal(k_m, (Cout,), dtype=jnp.float32)
    run_var = jnp.abs(jax.random.normal(k_v, (Cout,), dtype=jnp.float32)) + 0.5

    # Static (inference-time) constants: lowered weight + folded BN, computed once.
    # At deployment pass compute_dtype=jnp.bfloat16 (and loosen the test tolerance).
    w2, bias2 = prepare_convblock_constants(
        w, gamma, beta, run_mean, run_var,
        in_width=W, padding=1, bn_eps=1e-5, compute_dtype=jnp.float32)

    out = convblock_pallas(x, w2, bias2, padding=1, out_channels=Cout)
    out = jax.block_until_ready(out)

    ref = _reference(x, w, gamma, beta, run_mean, run_var, stride=1, padding=1)
    assert out.shape == (N, Cout, H, W), out.shape
    assert jnp.allclose(out, ref, atol=1e-4, rtol=1e-4), \
        float(jnp.max(jnp.abs(out - ref)))

    print("KERNEL_OK")
</pallas_src>

<mosaic_0001>
module attributes {stable_mosaic.version = 11 : i64} {
  func.func @_convblock_kernel(%arg0: i32, %arg1: memref<2x18x128xf32, #tpu.memory_space<vmem>>, %arg2: memref<3x128x128xf32, #tpu.memory_space<vmem>>, %arg3: memref<1x128xf32, #tpu.memory_space<vmem>>, %arg4: memref<32x128xf32, #tpu.memory_space<vmem>>) attributes {dimension_semantics = [#tpu.dimension_semantics<arbitrary>], iteration_bounds = array<i64: 1>, scalar_prefetch = 0 : i64, scratch_operands = 0 : i64, tpu.core_type = #tpu.core_type<tc>, window_params = [{pipeline_mode = #tpu.pipeline_mode<synchronous>, transform_indices = @transform_0, window_bounds = array<i64: 2, 18, 128>}, {pipeline_mode = #tpu.pipeline_mode<synchronous>, transform_indices = @transform_1, window_bounds = array<i64: 3, 128, 128>}, {pipeline_mode = #tpu.pipeline_mode<synchronous>, transform_indices = @transform_2, window_bounds = array<i64: 1, 128>}, {pipeline_mode = #tpu.pipeline_mode<synchronous>, transform_indices = @transform_3, window_bounds = array<i64: 32, 128>}]} {
    %cst = arith.constant 0.000000e+00 : f32
    %0 = vector.broadcast %cst : f32 to vector<32x128xf32>
    %c0 = arith.constant 0 : index
    %c0_0 = arith.constant 0 : index
    %c0_1 = arith.constant 0 : index
    %1 = vector.load %arg1[%c0, %c0_0, %c0_1] : memref<2x18x128xf32, #tpu.memory_space<vmem>>, vector<2x16x128xf32>
    %2 = vector.shape_cast %1 : vector<2x16x128xf32> to vector<32x128xf32>
    %c0_2 = arith.constant 0 : index
    %c0_3 = arith.constant 0 : index
    %c0_4 = arith.constant 0 : index
    %3 = vector.load %arg2[%c0_2, %c0_3, %c0_4] : memref<3x128x128xf32, #tpu.memory_space<vmem>>, vector<1x128x128xf32>
    %4 = vector.shape_cast %3 : vector<1x128x128xf32> to vector<128x128xf32>
    %cst_5 = arith.constant dense<0.000000e+00> : vector<32x128xf32>
    %5 = tpu.matmul %2, %4, %cst_5 {dimension_numbers = #tpu.dot_dimension_numbers<[1], [0], [0], [1], [0, 0, 1, 1], [], []>} : vector<32x128xf32>, vector<128x128xf32>, vector<32x128xf32> -> vector<32x128xf32>
    %6 = arith.addf %0, %5 : vector<32x128xf32>
    %c0_6 = arith.constant 0 : index
    %c1 = arith.constant 1 : index
    %c0_7 = arith.constant 0 : index
    %7 = vector.load %arg1[%c0_6, %c1, %c0_7] : memref<2x18x128xf32, #tpu.memory_space<vmem>>, vector<2x16x128xf32>
    %8 = vector.shape_cast %7 : vector<2x16x128xf32> to vector<32x128xf32>
    %c1_8 = arith.constant 1 : index
    %c0_9 = arith.constant 0 : index
    %c0_10 = arith.constant 0 : index
    %9 = vector.load %arg2[%c1_8, %c0_9, %c0_10] : memref<3x128x128xf32, #tpu.memory_space<vmem>>, vector<1x128x128xf32>
    %10 = vector.shape_cast %9 : vector<1x128x128xf32> to vector<128x128xf32>
    %cst_11 = arith.constant dense<0.000000e+00> : vector<32x128xf32>
    %11 = tpu.matmul %8, %10, %cst_11 {dimension_numbers = #tpu.dot_dimension_numbers<[1], [0], [0], [1], [0, 0, 1, 1], [], []>} : vector<32x128xf32>, vector<128x128xf32>, vector<32x128xf32> -> vector<32x128xf32>
    %12 = arith.addf %6, %11 : vector<32x128xf32>
    %c0_12 = arith.constant 0 : index
    %c2 = arith.constant 2 : index
    %c0_13 = arith.constant 0 : index
    %13 = vector.load %arg1[%c0_12, %c2, %c0_13] : memref<2x18x128xf32, #tpu.memory_space<vmem>>, vector<2x16x128xf32>
    %14 = vector.shape_cast %13 : vector<2x16x128xf32> to vector<32x128xf32>
    %c2_14 = arith.constant 2 : index
    %c0_15 = arith.constant 0 : index
    %c0_16 = arith.constant 0 : index
    %15 = vector.load %arg2[%c2_14, %c0_15, %c0_16] : memref<3x128x128xf32, #tpu.memory_space<vmem>>, vector<1x128x128xf32>
    %16 = vector.shape_cast %15 : vector<1x128x128xf32> to vector<128x128xf32>
    %cst_17 = arith.constant dense<0.000000e+00> : vector<32x128xf32>
    %17 = tpu.matmul %14, %16, %cst_17 {dimension_numbers = #tpu.dot_dimension_numbers<[1], [0], [0], [1], [0, 0, 1, 1], [], []>} : vector<32x128xf32>, vector<128x128xf32>, vector<32x128xf32> -> vector<32x128xf32>
    %18 = arith.addf %12, %17 : vector<32x128xf32>
    %c0_18 = arith.constant 0 : index
    %c0_19 = arith.constant 0 : index
    %19 = vector.load %arg3[%c0_18, %c0_19] : memref<1x128xf32, #tpu.memory_space<vmem>>, vector<1x128xf32>
    %20 = vector.broadcast %19 : vector<1x128xf32> to vector<32x128xf32>
    %21 = arith.addf %18, %20 : vector<32x128xf32>
    %cst_20 = arith.constant 0.000000e+00 : f32
    %22 = vector.broadcast %cst_20 : f32 to vector<32x128xf32>
    %23 = arith.maximumf %21, %22 : vector<32x128xf32>
    %c0_21 = arith.constant 0 : index
    %c0_22 = arith.constant 0 : index
    %24 = vector.load %arg4[%c0_21, %c0_22] : memref<32x128xf32, #tpu.memory_space<vmem>>, vector<32x128xf32>
    tpu.vector_store %arg4[%c0_21, %c0_22], %23 {strides = array<i32>} : memref<32x128xf32, #tpu.memory_space<vmem>>, vector<32x128xf32>,
    return
  }
  func.func @transform_0(%arg0: i32) -> (i32, i32, i32) {
    %c0_i32 = arith.constant 0 : i32
    %c0_i32_0 = arith.constant 0 : i32
    %c0_i32_1 = arith.constant 0 : i32
    %c0_i32_2 = arith.constant 0 : i32
    return %c0_i32, %c0_i32_0, %c0_i32_1 : i32, i32, i32
  }
  func.func @transform_1(%arg0: i32) -> (i32, i32, i32) {
    %c0_i32 = arith.constant 0 : i32
    %c0_i32_0 = arith.constant 0 : i32
    %c0_i32_1 = arith.constant 0 : i32
    %c0_i32_2 = arith.constant 0 : i32
    return %c0_i32, %c0_i32_0, %c0_i32_1 : i32, i32, i32
  }
  func.func @transform_2(%arg0: i32) -> (i32, i32) {
    %c0_i32 = arith.constant 0 : i32
    %c0_i32_0 = arith.constant 0 : i32
    %c0_i32_1 = arith.constant 0 : i32
    return %c0_i32, %c0_i32_0 : i32, i32
  }
  func.func @transform_3(%arg0: i32) -> (i32, i32) {
    %c0_i32 = arith.constant 0 : i32
    %c0_i32_0 = arith.constant 0 : i32
    %c0_i32_1 = arith.constant 0 : i32
    return %c0_i32, %c0_i32_0 : i32, i32
  }
}

</mosaic_0001>

<llo_original>
// kernel: convblock_pallas.1
$region0: #{convblock_pallas.1}
  #allocation0 [shape = 'u32[]', space=smem, size = 0x4, offset = 0x4, fixed_abs, tag = 'smem constant byte address 0x4 - core index']
  #allocation1 [shape = 'u32[144,128]{1,0:T(1,128)}', space=vmem, size = 0x12000, scoped, tag = 'internal scratch']
  %s0 = inlined_call_operand.vmem [shape: f32[2,18,128], index: 0, kind: input, shape index: {}]
  %s1 = inlined_call_operand.vmem [shape: f32[3,128,128], index: 1, kind: input, shape index: {}]
  %s2 = inlined_call_operand.vmem [shape: f32[1,128], index: 2, kind: input, shape index: {}]
  %s3 = inlined_call_operand.vmem [shape: f32[32,128], index: 3, kind: output, shape index: {}]
  %s4 = sld [smem:[#allocation0]]
  $region22: #{convblock_pallas.1} parent=0
    _
  %s6 = ssub.s32 1, %s4
  %s7 = scalar_select 0, %s6, %s4
  // Predicated region
  $region2: #{convblock_pallas.1} parent=0 // pred_check
    _
  $region3: #{convblock_pallas.1} parent=0 // pred_check_branch
    %9 = sbr.rel (0) target = $region5
  $region4: #{convblock_pallas.1} parent=0 // pred_region
    _
  $region5: #{convblock_pallas.1} parent=0 // pred_fallthru
    _
  // Predicated region
  $region6: #{convblock_pallas.1} parent=0 // pred_check
    _
  $region7: #{convblock_pallas.1} parent=0 // pred_check_branch
    %11 = sbr.rel (0) target = $region9
  $region8: #{convblock_pallas.1} parent=0 // pred_region
    _
  $region9: #{convblock_pallas.1} parent=0 // pred_fallthru
    _
  // Predicated region
  $region10: #{convblock_pallas.1} parent=0 // pred_check
    _
  $region11: #{convblock_pallas.1} parent=0 // pred_check_branch
    %13 = sbr.rel (0) target = $region13
  $region12: #{convblock_pallas.1} parent=0 // pred_region
    _
  $region13: #{convblock_pallas.1} parent=0 // pred_fallthru
    _
  %v14 = vld [vmem:[%s0] sm:$0xff]
  %v15 = vld [vmem:[%s0 + $0x8] sm:$0xff]
  %v16 = vld [vmem:[%s0 + $0x18] sm:$0xff]
  %v17 = vld [vmem:[%s0 + $0x20] sm:$0xff]
  %v18 = vld [vmem:[%s1] sm:$0xff]
  %v19 = vld [vmem:[%s1 + $0x8] sm:$0xff]
  %v20 = vld [vmem:[%s1 + $0x10] sm:$0xff]
  %v21 = vld [vmem:[%s1 + $0x18] sm:$0xff]
  %v22 = vld [vmem:[%s1 + $0x20] sm:$0xff]
  %v23 = vld [vmem:[%s1 + $0x28] sm:$0xff]
  %v24 = vld [vmem:[%s1 + $0x30] sm:$0xff]
  %v25 = vld [vmem:[%s1 + $0x38] sm:$0xff]
  %v26 = vld [vmem:[%s1 + $0x40] sm:$0xff]
  %v27 = vld [vmem:[%s1 + $0x48] sm:$0xff]
  %v28 = vld [vmem:[%s1 + $0x50] sm:$0xff]
  %v29 = vld [vmem:[%s1 + $0x58] sm:$0xff]
  %v30 = vld [vmem:[%s1 + $0x60] sm:$0xff]
  %v31 = vld [vmem:[%s1 + $0x68] sm:$0xff]
  %v32 = vld [vmem:[%s1 + $0x70] sm:$0xff]
  %v33 = vld [vmem:[%s1 + $0x78] sm:$0xff]
  %v34 = vld [vmem:[%s0 + $0x1] sm:$0xff]
  %v35 = vld [vmem:[%s0 + $0x9] sm:$0xff]
  %v36 = vld [vmem:[%s0 + $0x19] sm:$0xff]
  %v37 = vld [vmem:[%s0 + $0x21] sm:$0xff]
  %s38 = scalar_lea.vmem %s1, 128
  %v39 = vld [vmem:[%s38] sm:$0xff]
  %v40 = vld [vmem:[%s38 + $0x8] sm:$0xff]
  %v41 = vld [vmem:[%s38 + $0x10] sm:$0xff]
  %v42 = vld [vmem:[%s38 + $0x18] sm:$0xff]
  %v43 = vld [vmem:[%s38 + $0x20] sm:$0xff]
  %v44 = vld [vmem:[%s38 + $0x28] sm:$0xff]
  %v45 = vld [vmem:[%s38 + $0x30] sm:$0xff]
  %v46 = vld [vmem:[%s38 + $0x38] sm:$0xff]
  %v47 = vld [vmem:[%s38 + $0x40] sm:$0xff]
  %v48 = vld [vmem:[%s38 + $0x48] sm:$0xff]
  %v49 = vld [vmem:[%s38 + $0x50] sm:$0xff]
  %v50 = vld [vmem:[%s38 + $0x58] sm:$0xff]
  %v51 = vld [vmem:[%s38 + $0x60] sm:$0xff]
  %v52 = vld [vmem:[%s38 + $0x68] sm:$0xff]
  %v53 = vld [vmem:[%s38 + $0x70] sm:$0xff]
  %v54 = vld [vmem:[%s38 + $0x78] sm:$0xff]
  %55 = vmatprep.subr.mxu0 0.0
  %56 = vmatpush1.msra.mxu0 %v54
  %57 = vmatprep.subr.mxu0 0.0
  %58 = vmatpush1.msra.mxu0 %v53
  %59 = vmatprep.subr.mxu0 0.0
  %60 = vmatpush1.msra.mxu0 %v52
  %61 = vmatprep.subr.mxu0 0.0
  %62 = vmatpush1.msra.mxu0 %v51
  %63 = vmatprep.subr.mxu0 0.0
  %64 = vmatpush1.msra.mxu0 %v50
  %65 = vmatprep.subr.mxu0 0.0
  %66 = vmatpush1.msra.mxu0 %v49
  %67 = vmatprep.subr.mxu0 0.0
  %68 = vmatpush1.msra.mxu0 %v48
  %69 = vmatprep.subr.mxu0 0.0
  %70 = vmatpush1.msra.mxu0 %v47
  %71 = vmatprep.subr.mxu0 0.0
  %72 = vmatpush1.msra.mxu0 %v46
  %73 = vmatprep.subr.mxu0 0.0
  %74 = vmatpush1.msra.mxu0 %v45
  %75 = vmatprep.subr.mxu0 0.0
  %76 = vmatpush1.msra.mxu0 %v44
  %77 = vmatprep.subr.mxu0 0.0
  %78 = vmatpush1.msra.mxu0 %v43
  %79 = vmatprep.subr.mxu0 0.0
  %80 = vmatpush1.msra.mxu0 %v42
  %81 = vmatprep.subr.mxu0 0.0
  %82 = vmatpush1.msra.mxu0 %v41
  %83 = vmatprep.subr.mxu0 0.0
  %84 = vmatpush1.msra.mxu0 %v40
  %85 = vmatprep.subr.mxu0 0.0
  %86 = vmatpush1.msra.mxu0 %v39
  %87 = vmatprep.subr.mxu0 0.0
  %88 = vmatpush2.msra.mxu0 0.0
  %89 = vmatprep.subr.mxu0 0.0
  %90 = vmatpush2.msra.mxu0 0.0
  %91 = vmatprep.subr.mxu0 0.0
  %92 = vmatpush2.msra.mxu0 0.0
  %93 = vmatprep.subr.mxu0 0.0
  %94 = vmatpush2.msra.mxu0 0.0
  %95 = vmatprep.subr.mxu0 0.0
  %96 = vmatpush2.msra.mxu0 0.0
  %97 = vmatprep.subr.mxu0 0.0
  %98 = vmatpush2.msra.mxu0 0.0
  %99 = vmatprep.subr.mxu0 0.0
  %100 = vmatpush2.msra.mxu0 0.0
  %101 = vmatprep.subr.mxu0 0.0
  %102 = vmatpush2.msra.mxu0 0.0
  %103 = vmatprep.subr.mxu0 0.0
  %104 = vmatpush2.msra.mxu0 0.0
  %105 = vmatprep.subr.mxu0 0.0
  %106 = vmatpush2.msra.mxu0 0.0
  %107 = vmatprep.subr.mxu0 0.0
  %108 = vmatpush2.msra.mxu0 0.0
  %109 = vmatprep.subr.mxu0 0.0
  %110 = vmatpush2.msra.mxu0 0.0
  %111 = vmatprep.subr.mxu0 0.0
  %112 = vmatpush2.msra.mxu0 0.0
  %113 = vmatprep.subr.mxu0 0.0
  %114 = vmatpush2.msra.mxu0 0.0
  %115 = vmatprep.subr.mxu0 0.0
  %116 = vmatpush2.msra.mxu0 0.0
  %117 = vmatprep.subr.mxu0 0.0
  %118 = vmatpush2.msra.mxu0 0.0
  %119 = vmatprep.mubr.f32.mxu0 0.0
  %120 = vmatmul.mubr.f32.gmra.mxu0 %v34
  %v121 = vpop.f32.mrf.mxu0
  %v122 = vadd.f32 0.0, %v121
  %v123 = vpop.f32.mrf.mxu0
  %124 = vmatprep.mubr.f32.mxu0 0.0
  %125 = vmatmul.mubr.f32.gmra.mxu0 %v35
  %v126 = vpop.f32.mrf.mxu0
  %v127 = vadd.f32 0.0, %v126
  %v128 = vpop.f32.mrf.mxu0
  %129 = vmatprep.mubr.f32.mxu0 0.0
  %130 = vmatmul.mubr.f32.gmra.mxu0 %v36
  %v131 = vpop.f32.mrf.mxu0
  %v132 = vadd.f32 0.0, %v131
  %v133 = vpop.f32.mrf.mxu0
  %134 = vmatprep.mubr.f32.mxu0 0.0
  %135 = vmatmul.mubr.f32.gmra.mxu0 %v37
  %v136 = vpop.f32.mrf.mxu0
  %v137 = vadd.f32 0.0, %v136
  %v138 = vpop.f32.mrf.mxu0
  %139 = vdwg.mxu0
  %140 = vmatprep.subr.mxu0 0.0
  %141 = vmatpush1.msra.mxu0 %v33
  %142 = vmatprep.subr.mxu0 0.0
  %143 = vmatpush1.msra.mxu0 %v32
  %144 = vmatprep.subr.mxu0 0.0
  %145 = vmatpush1.msra.mxu0 %v31
  %146 = vmatprep.subr.mxu0 0.0
  %147 = vmatpush1.msra.mxu0 %v30
  %148 = vmatprep.subr.mxu0 0.0
  %149 = vmatpush1.msra.mxu0 %v29
  %150 = vmatprep.subr.mxu0 0.0
  %151 = vmatpush1.msra.mxu0 %v28
  %152 = vmatprep.subr.mxu0 0.0
  %153 = vmatpush1.msra.mxu0 %v27
  %154 = vmatprep.subr.mxu0 0.0
  %155 = vmatpush1.msra.mxu0 %v26
  %156 = vmatprep.subr.mxu0 0.0
  %157 = vmatpush1.msra.mxu0 %v25
  %158 = vmatprep.subr.mxu0 0.0
  %159 = vmatpush1.msra.mxu0 %v24
  %160 = vmatprep.subr.mxu0 0.0
  %161 = vmatpush1.msra.mxu0 %v23
  %162 = vmatprep.subr.mxu0 0.0
  %163 = vmatpush1.msra.mxu0 %v22
  %164 = vmatprep.subr.mxu0 0.0
  %165 = vmatpush1.msra.mxu0 %v21
  %166 = vmatprep.subr.mxu0 0.0
  %167 = vmatpush1.msra.mxu0 %v20
  %168 = vmatprep.subr.mxu0 0.0
  %169 = vmatpush1.msra.mxu0 %v19
  %170 = vmatprep.subr.mxu0 0.0
  %171 = vmatpush1.msra.mxu0 %v18
  %172 = vmatprep.subr.mxu0 0.0
  %173 = vmatpush2.msra.mxu0 0.0
  %174 = vmatprep.subr.mxu0 0.0
  %175 = vmatpush2.msra.mxu0 0.0
  %176 = vmatprep.subr.mxu0 0.0
  %177 = vmatpush2.msra.mxu0 0.0
  %178 = vmatprep.subr.mxu0 0.0
  %179 = vmatpush2.msra.mxu0 0.0
  %180 = vmatprep.subr.mxu0 0.0
  %181 = vmatpush2.msra.mxu0 0.0
  %182 = vmatprep.subr.mxu0 0.0
  %183 = vmatpush2.msra.mxu0 0.0
  %184 = vmatprep.subr.mxu0 0.0
  %185 = vmatpush2.msra.mxu0 0.0
  %186 = vmatprep.subr.mxu0 0.0
  %187 = vmatpush2.msra.mxu0 0.0
  %188 = vmatprep.subr.mxu0 0.0
  %189 = vmatpush2.msra.mxu0 0.0
  %190 = vmatprep.subr.mxu0 0.0
  %191 = vmatpush2.msra.mxu0 0.0
  %192 = vmatprep.subr.mxu0 0.0
  %193 = vmatpush2.msra.mxu0 0.0
  %194 = vmatprep.subr.mxu0 0.0
  %195 = vmatpush2.msra.mxu0 0.0
  %196 = vmatprep.subr.mxu0 0.0
  %197 = vmatpush2.msra.mxu0 0.0
  %198 = vmatprep.subr.mxu0 0.0
  %199 = vmatpush2.msra.mxu0 0.0
  %200 = vmatprep.subr.mxu0 0.0
  %201 = vmatpush2.msra.mxu0 0.0
  %202 = vmatprep.subr.mxu0 0.0
  %203 = vmatpush2.msra.mxu0 0.0
  %204 = vmatprep.mubr.f32.mxu0 0.0
  %205 = vmatmul.mubr.f32.gmra.mxu0 %v14
  %v206 = vpop.f32.mrf.mxu0
  %v207 = vadd.f32 %v122, %v206
  %v208 = vpop.f32.mrf.mxu0
  %209 = vmatprep.mubr.f32.mxu0 0.0
  %210 = vmatmul.mubr.f32.gmra.mxu0 %v15
  %v211 = vpop.f32.mrf.mxu0
  %v212 = vadd.f32 %v127, %v211
  %v213 = vpop.f32.mrf.mxu0
  %214 = vmatprep.mubr.f32.mxu0 0.0
  %215 = vmatmul.mubr.f32.gmra.mxu0 %v16
  %v216 = vpop.f32.mrf.mxu0
  %v217 = vadd.f32 %v132, %v216
  %v218 = vpop.f32.mrf.mxu0
  %219 = vmatprep.mubr.f32.mxu0 0.0
  %220 = vmatmul.mubr.f32.gmra.mxu0 %v17
  %v221 = vpop.f32.mrf.mxu0
  %v222 = vadd.f32 %v137, %v221
  %v223 = vpop.f32.mrf.mxu0
  %224 = vdwg.mxu0
  %v225 = vld [vmem:[%s0 + $0x2] sm:$0xff]
  %v226 = vld [vmem:[%s0 + $0xa] sm:$0xff]
  %v227 = vld [vmem:[%s0 + $0x1a] sm:$0xff]
  %v228 = vld [vmem:[%s0 + $0x22] sm:$0xff]
  %s229 = scalar_lea.vmem %s1, 256
  %v230 = vld [vmem:[%s229] sm:$0xff]
  %v231 = vld [vmem:[%s229 + $0x8] sm:$0xff]
  %v232 = vld [vmem:[%s229 + $0x10] sm:$0xff]
  %v233 = vld [vmem:[%s229 + $0x18] sm:$0xff]
  %v234 = vld [vmem:[%s229 + $0x20] sm:$0xff]
  %v235 = vld [vmem:[%s229 + $0x28] sm:$0xff]
  %v236 = vld [vmem:[%s229 + $0x30] sm:$0xff]
  %v237 = vld [vmem:[%s229 + $0x38] sm:$0xff]
  %v238 = vld [vmem:[%s229 + $0x40] sm:$0xff]
  %v239 = vld [vmem:[%s229 + $0x48] sm:$0xff]
  %v240 = vld [vmem:[%s229 + $0x50] sm:$0xff]
  %v241 = vld [vmem:[%s229 + $0x58] sm:$0xff]
  %v242 = vld [vmem:[%s229 + $0x60] sm:$0xff]
  %v243 = vld [vmem:[%s229 + $0x68] sm:$0xff]
  %v244 = vld [vmem:[%s229 + $0x70] sm:$0xff]
  %v245 = vld [vmem:[%s229 + $0x78] sm:$0xff]
  %246 = vmatprep.subr.mxu0 0.0
  %247 = vmatpush1.msra.mxu0 %v245
  %248 = vmatprep.subr.mxu0 0.0
  %249 = vmatpush1.msra.mxu0 %v244
  %250 = vmatprep.subr.mxu0 0.0
  %251 = vmatpush1.msra.mxu0 %v243
  %252 = vmatprep.subr.mxu0 0.0
  %253 = vmatpush1.msra.mxu0 %v242
  %254 = vmatprep.subr.mxu0 0.0
  %255 = vmatpush1.msra.mxu0 %v241
  %256 = vmatprep.subr.mxu0 0.0
  %257 = vmatpush1.msra.mxu0 %v240
  %258 = vmatprep.subr.mxu0 0.0
  %259 = vmatpush1.msra.mxu0 %v239
  %260 = vmatprep.subr.mxu0 0.0
  %261 = vmatpush1.msra.mxu0 %v238
  %262 = vmatprep.subr.mxu0 0.0
  %263 = vmatpush1.msra.mxu0 %v237
  %264 = vmatprep.subr.mxu0 0.0
  %265 = vmatpush1.msra.mxu0 %v236
  %266 = vmatprep.subr.mxu0 0.0
  %267 = vmatpush1.msra.mxu0 %v235
  %268 = vmatprep.subr.mxu0 0.0
  %269 = vmatpush1.msra.mxu0 %v234
  %270 = vmatprep.subr.mxu0 0.0
  %271 = vmatpush1.msra.mxu0 %v233
  %272 = vmatprep.subr.mxu0 0.0
  %273 = vmatpush1.msra.mxu0 %v232
  %274 = vmatprep.subr.mxu0 0.0
  %275 = vmatpush1.msra.mxu0 %v231
  %276 = vmatprep.subr.mxu0 0.0
  %277 = vmatpush1.msra.mxu0 %v230
  %278 = vmatprep.subr.mxu0 0.0
  %279 = vmatpush2.msra.mxu0 0.0
  %280 = vmatprep.subr.mxu0 0.0
  %281 = vmatpush2.msra.mxu0 0.0
  %282 = vmatprep.subr.mxu0 0.0
  %283 = vmatpush2.msra.mxu0 0.0
  %284 = vmatprep.subr.mxu0 0.0
  %285 = vmatpush2.msra.mxu0 0.0
  %286 = vmatprep.subr.mxu0 0.0
  %287 = vmatpush2.msra.mxu0 0.0
  %288 = vmatprep.subr.mxu0 0.0
  %289 = vmatpush2.msra.mxu0 0.0
  %290 = vmatprep.subr.mxu0 0.0
  %291 = vmatpush2.msra.mxu0 0.0
  %292 = vmatprep.subr.mxu0 0.0
  %293 = vmatpush2.msra.mxu0 0.0
  %294 = vmatprep.subr.mxu0 0.0
  %295 = vmatpush2.msra.mxu0 0.0
  %296 = vmatprep.subr.mxu0 0.0
  %297 = vmatpush2.msra.mxu0 0.0
  %298 = vmatprep.subr.mxu0 0.0
  %299 = vmatpush2.msra.mxu0 0.0
  %300 = vmatprep.subr.mxu0 0.0
  %301 = vmatpush2.msra.mxu0 0.0
  %302 = vmatprep.subr.mxu0 0.0
  %303 = vmatpush2.msra.mxu0 0.0
  %304 = vmatprep.subr.mxu0 0.0
  %305 = vmatpush2.msra.mxu0 0.0
  %306 = vmatprep.subr.mxu0 0.0
  %307 = vmatpush2.msra.mxu0 0.0
  %308 = vmatprep.subr.mxu0 0.0
  %309 = vmatpush2.msra.mxu0 0.0
  %310 = vmatprep.mubr.f32.mxu0 0.0
  %311 = vmatmul.mubr.f32.gmra.mxu0 %v225
  %v312 = vpop.f32.mrf.mxu0
  %v313 = vadd.f32 0.0, %v312
  %v314 = vpop.f32.mrf.mxu0
  %315 = vmatprep.mubr.f32.mxu0 0.0
  %316 = vmatmul.mubr.f32.gmra.mxu0 %v226
  %v317 = vpop.f32.mrf.mxu0
  %v318 = vadd.f32 0.0, %v317
  %v319 = vpop.f32.mrf.mxu0
  %320 = vmatprep.mubr.f32.mxu0 0.0
  %321 = vmatmul.mubr.f32.gmra.mxu0 %v227
  %v322 = vpop.f32.mrf.mxu0
  %v323 = vadd.f32 0.0, %v322
  %v324 = vpop.f32.mrf.mxu0
  %325 = vmatprep.mubr.f32.mxu0 0.0
  %326 = vmatmul.mubr.f32.gmra.mxu0 %v228
  %v327 = vpop.f32.mrf.mxu0
  %v328 = vadd.f32 0.0, %v327
  %v329 = vpop.f32.mrf.mxu0
  %330 = vdwg.mxu0
  %v331 = vadd.f32 %v207, %v313
  %v332 = vadd.f32 %v212, %v318
  %v333 = vadd.f32 %v217, %v323
  %v334 = vadd.f32 %v222, %v328
  %v335 = vld [vmem:[%s2] sm:$0x1]
  %v337 = vlaneseq
  %v338 = vshrl.u32 %v337, 7
  %v339 = vsub.s32 0, %v338
  %v340 = vrot.slane %v335, %v339
  %v342 = vadd.f32 %v331, %v340
  %v343 = vadd.f32 %v332, %v340
  %v344 = vadd.f32 %v333, %v340
  %v345 = vadd.f32 %v334, %v340
  %v346 = vmax.f32 %v342, 0.0
  %v347 = vmax.f32 %v343, 0.0
  %v348 = vmax.f32 %v344, 0.0
  %v349 = vmax.f32 %v345, 0.0
  %350 = vst [vmem:[%s3] sm:$0xff] %v346
  %351 = vst [vmem:[%s3 + $0x8] sm:$0xff] %v347
  %352 = vst [vmem:[%s3 + $0x10] sm:$0xff] %v348
  %353 = vst [vmem:[%s3 + $0x18] sm:$0xff] %v349
  // Predicated region
  $region14: #{convblock_pallas.1} parent=0 // pred_check
    _
  $region15: #{convblock_pallas.1} parent=0 // pred_check_branch
    %355 = sbr.rel (0) target = $region17
  $region16: #{convblock_pallas.1} parent=0 // pred_region
    _
  $region17: #{convblock_pallas.1} parent=0 // pred_fallthru
    _
  // Predicated region
  $region18: #{convblock_pallas.1} parent=0 // pred_check
    _
  $region19: #{convblock_pallas.1} parent=0 // pred_check_branch
    %357 = sbr.rel (0) target = $region21
  $region20: #{convblock_pallas.1} parent=0 // pred_region
    _
  $region21: #{convblock_pallas.1} parent=0 // pred_fallthru
    _

</llo_original>
